<compile_context>
chip_gen: v7x
topology: tpu7x:2x2x1
jax: 0.10.0
libtpu: 0.0.40
codegen_flags: <defaults>
</compile_context>

<pallas_src>
import functools
import math

import jax
import jax.numpy as jnp
from jax.experimental import pallas as pl
from jax.experimental.pallas import tpu as pltpu

_WRONG_DIST = 1e20               # WRONG_LABEL_PADDING_DISTANCE in CFBI
_VMEM_LIMIT = 48 * 1024 * 1024   # <= ~48 MiB keeps headroom on v7x (64 MiB physical VMEM)


def _round_up(x, m):
    return ((x + m - 1) // m) * m


# ----------------------------------------------------------------------------
# Pallas kernels
# ----------------------------------------------------------------------------
def _matmul_bias_kernel(x_ref, w_ref, b_ref, o_ref, *, relu):
    y = jnp.dot(x_ref[...], w_ref[...], preferred_element_type=jnp.float32) + b_ref[...]
    if relu:
        y = jnp.maximum(y, 0.0)
    o_ref[...] = y


def matmul_bias(x, w, b, relu=False):
    """1x1-conv-as-matmul: (M, K) @ (K, N) + b, optional ReLU. 1024-row tiles.
    NOTE: zero-padded rows produce bias(+ReLU) values that are sliced off below."""
    M, K = x.shape
    N = w.shape[1]
    TM = 1024 if M > 1024 else M
    Mp = _round_up(M, TM)
    if Mp != M:
        x = jnp.pad(x, ((0, Mp - M), (0, 0)))
    grid = (Mp // TM,)
    out = pl.pallas_call(
        functools.partial(_matmul_bias_kernel, relu=relu),
        out_shape=jax.ShapeDtypeStruct((Mp, N), jnp.float32),
        grid_spec=pltpu.PrefetchScalarGridSpec(
            num_scalar_prefetch=0, grid=grid,
            in_specs=[pl.BlockSpec((TM, K), lambda i: (i, 0)),
                      pl.BlockSpec((K, N), lambda i: (0, 0)),
                      pl.BlockSpec((1, N), lambda i: (0, 0))],
            out_specs=pl.BlockSpec((TM, N), lambda i: (i, 0))),
        compiler_params=pltpu.CompilerParams(
            dimension_semantics=("parallel",), vmem_limit_bytes=_VMEM_LIMIT),
    )(x, w, b.reshape(1, -1))
    return out[:M] if Mp != M else out


def _global_matching_kernel(q_ref, qn_ref, rt_ref, base_ref, bias_ref, o_ref, acc_ref,
                            *, obj_num):
    k = pl.program_id(1)
    nk = pl.num_programs(1)
    tk = rt_ref.shape[1]
    n_grp = tk // 128

    @pl.when(k == 0)
    def _init():
        acc_ref[...] = jnp.full(acc_ref.shape, _WRONG_DIST, jnp.float32)

    # -2 * q . r cross term (bf16 MXU, f32 accumulation); qn is added at finalize.
    d = jnp.dot(q_ref[...], rt_ref[...], preferred_element_type=jnp.float32) * (-2.0)
    base = base_ref[...]                                     # (obj, tk): rn + wrong-label
    for o in range(obj_num):
        d_o = d + base[o:o + 1, :]
        # VALU lane-group partial min; the XLU cross-lane reduce is deferred to finalize.
        m = d_o[:, 0:128]
        for g in range(1, n_grp):
            m = jnp.minimum(m, d_o[:, g * 128:(g + 1) * 128])
        acc_ref[o] = jnp.minimum(acc_ref[o], m)

    @pl.when(k == nk - 1)
    def _finalize():
        lane = jax.lax.broadcasted_iota(jnp.int32, o_ref.shape, 1)
        out = jnp.full(o_ref.shape, _WRONG_DIST, jnp.float32)
        for o in range(obj_num):
            col = jnp.min(acc_ref[o], axis=1, keepdims=True)     # single XLU reduce / obj
            out = jnp.where(lane == o, col, out)
        o_ref[...] = (jax.nn.sigmoid(out + qn_ref[...] + bias_ref[...]) - 0.5) * 2.0


def global_matching(query, reference, ref_lab, bias_row, obj_num):
    """query (Pq, C) f32, reference (Pr, C) f32, ref_lab (obj, Pr) in {0,1}.
    Returns (Pq, obj) distance-bias features."""
    Pq, C = query.shape
    Pr = reference.shape[0]
    lane_pad = max(128, _round_up(obj_num, 128))
    TQ = 512 if Pq > 512 else _round_up(Pq, 8)
    Pq_pad = _round_up(Pq, TQ)
    TK = 1024 if Pr > 1024 else _round_up(Pr, 128)
    Pr_pad = _round_up(Pr, TK)

    # hoisted out of the kernel: bf16 cast of q (halves q DMA) and ||q||^2
    qn = jnp.sum(query * query, axis=1, keepdims=True)               # (Pq, 1) f32
    q16 = query.astype(jnp.bfloat16)
    if Pq_pad != Pq:
        q16 = jnp.pad(q16, ((0, Pq_pad - Pq), (0, 0)))
        qn = jnp.pad(qn, ((0, Pq_pad - Pq), (0, 0)))
    rt = jnp.pad(jnp.transpose(reference).astype(jnp.bfloat16),
                 ((0, 0), (0, Pr_pad - Pr)))                          # (C, Pr_pad) bf16
    rn = jnp.sum(reference * reference, axis=1)                       # (Pr,) f32
    base = rn[None, :] + (1.0 - ref_lab) * _WRONG_DIST                # (obj, Pr)
    base = jnp.pad(base, ((0, 0), (0, Pr_pad - Pr)), constant_values=_WRONG_DIST)
    bias = jnp.pad(bias_row, ((0, 0), (0, lane_pad - obj_num)))

    grid = (Pq_pad // TQ, Pr_pad // TK)
    out = pl.pallas_call(
        functools.partial(_global_matching_kernel, obj_num=obj_num),
        out_shape=jax.ShapeDtypeStruct((Pq_pad, lane_pad), jnp.float32),
        grid_spec=pltpu.PrefetchScalarGridSpec(
            num_scalar_prefetch=0, grid=grid,
            in_specs=[pl.BlockSpec((TQ, C), lambda i, k: (i, 0)),
                      pl.BlockSpec((TQ, 1), lambda i, k: (i, 0)),
                      pl.BlockSpec((C, TK), lambda i, k: (0, k)),
                      pl.BlockSpec((obj_num, TK), lambda i, k: (0, k)),
                      pl.BlockSpec((1, lane_pad), lambda i, k: (0, 0))],
            out_specs=pl.BlockSpec((TQ, lane_pad), lambda i, k: (i, 0)),
            scratch_shapes=[pltpu.VMEM((obj_num, TQ, 128), jnp.float32)]),
        compiler_params=pltpu.CompilerParams(
            dimension_semantics=("parallel", "arbitrary"),
            vmem_limit_bytes=_VMEM_LIMIT),
    )(q16, qn, rt, base, bias)
    return out[:Pq, :obj_num]


def _local_matching_kernel(q_ref, qn_ref, pt_ref, base_ref, bias_ref, o_ref, acc_ref,
                           *, obj_num, distances, width, n_rblk, dmax):
    i = pl.program_id(0)
    kk = pl.program_id(1)
    nkk = pl.num_programs(1)
    tq = q_ref.shape[0]
    tk = pt_ref.shape[1]
    n_grp = tk // 128
    nd = len(distances)

    @pl.when(kk == 0)
    def _init():
        acc_ref[...] = jnp.full(acc_ref.shape, _WRONG_DIST, jnp.float32)

    d = jnp.dot(q_ref[...], pt_ref[...], preferred_element_type=jnp.float32) * (-2.0)

    # actual reference block (band-limited grid); must match the wrapper's index_map
    q_start_row = (i * tq) // width
    start_blk = (jnp.maximum(q_start_row - dmax, 0) * width) // tk
    rblk = jnp.minimum(start_blk + kk, n_rblk - 1)

    # window masks generated in-kernel (no O(P^2) mask DMA); single Chebyshev distance
    qidx = i * tq + jax.lax.broadcasted_iota(jnp.int32, (tq, 1), 0)
    ridx = rblk * tk + jax.lax.broadcasted_iota(jnp.int32, (1, tk), 1)
    cd = jnp.maximum(jnp.abs(qidx // width - ridx // width),
                     jnp.abs(qidx % width - ridx % width))            # (tq, tk)

    base = base_ref[...]                                              # (obj, tk)
    for o in range(obj_num):
        d_o = d + base[o:o + 1, :]
        for di, dd in enumerate(distances):
            d_m = jnp.where(cd <= dd, d_o, _WRONG_DIST)
            m = d_m[:, 0:128]
            for g in range(1, n_grp):
                m = jnp.minimum(m, d_m[:, g * 128:(g + 1) * 128])
            a = o * nd + di
            acc_ref[a] = jnp.minimum(acc_ref[a], m)

    @pl.when(kk == nkk - 1)
    def _finalize():
        lane = jax.lax.broadcasted_iota(jnp.int32, o_ref.shape, 1)
        out = jnp.full(o_ref.shape, _WRONG_DIST, jnp.float32)
        for a in range(obj_num * nd):
            col = jnp.min(acc_ref[a], axis=1, keepdims=True)
            out = jnp.where(lane == a, col, out)
        o_ref[...] = (jax.nn.sigmoid(out + qn_ref[...] + bias_ref[...]) - 0.5) * 2.0


def local_matching(query, prev, prev_lab, distances, bias_row, obj_num, width):
    Pq, C = query.shape
    Pr = prev.shape[0]
    height = Pr // width
    nd = len(distances)
    dmax = int(max(distances))
    cols = obj_num * nd
    lane_pad = max(128, _round_up(cols, 128))
    TQ = 512 if Pq > 512 else _round_up(Pq, 8)
    Pq_pad = _round_up(Pq, TQ)
    TK = 1024 if Pr > 1024 else _round_up(Pr, 128)
    Pr_pad = _round_up(Pr, TK)
    n_rblk = Pr_pad // TK

    qn = jnp.sum(query * query, axis=1, keepdims=True)
    q16 = query.astype(jnp.bfloat16)
    if Pq_pad != Pq:
        q16 = jnp.pad(q16, ((0, Pq_pad - Pq), (0, 0)))
        qn = jnp.pad(qn, ((0, Pq_pad - Pq), (0, 0)))
    pt = jnp.pad(jnp.transpose(prev).astype(jnp.bfloat16), ((0, 0), (0, Pr_pad - Pr)))
    pn = jnp.sum(prev * prev, axis=1)
    base = pn[None, :] + (1.0 - prev_lab) * _WRONG_DIST
    base = jnp.pad(base, ((0, 0), (0, Pr_pad - Pr)), constant_values=_WRONG_DIST)
    bias = jnp.pad(bias_row, ((0, 0), (0, lane_pad - cols)))

    # Band-limit the reference axis: only prev-frame tiles whose rows can fall within
    # +/- dmax of the query tile's rows are visited.  nkk is the static worst case over
    # all query tiles; clamped duplicate visits are harmless (running min is idempotent).
    nkk = 1
    for ii in range(Pq_pad // TQ):
        if ii * TQ >= Pq:
            continue
        q_start_row = (ii * TQ) // width
        q_end_row = min(((ii + 1) * TQ - 1) // width, height - 1)
        start_blk = (max(q_start_row - dmax, 0) * width) // TK
        end_blk = (min((q_end_row + dmax + 1) * width, Pr) - 1) // TK
        nkk = max(nkk, end_blk - start_blk + 1)

    def _rblk(i, kk):
        q_start_row = (i * TQ) // width
        start_blk = (jnp.maximum(q_start_row - dmax, 0) * width) // TK
        return jnp.minimum(start_blk + kk, n_rblk - 1)

    grid = (Pq_pad // TQ, nkk)
    out = pl.pallas_call(
        functools.partial(_local_matching_kernel, obj_num=obj_num,
                          distances=tuple(int(dd) for dd in distances),
                          width=int(width), n_rblk=n_rblk, dmax=dmax),
        out_shape=jax.ShapeDtypeStruct((Pq_pad, lane_pad), jnp.float32),
        grid_spec=pltpu.PrefetchScalarGridSpec(
            num_scalar_prefetch=0, grid=grid,
            in_specs=[pl.BlockSpec((TQ, C), lambda i, kk: (i, 0)),
                      pl.BlockSpec((TQ, 1), lambda i, kk: (i, 0)),
                      pl.BlockSpec((C, TK), lambda i, kk: (0, _rblk(i, kk))),
                      pl.BlockSpec((obj_num, TK), lambda i, kk: (0, _rblk(i, kk))),
                      pl.BlockSpec((1, lane_pad), lambda i, kk: (0, 0))],
            out_specs=pl.BlockSpec((TQ, lane_pad), lambda i, kk: (i, 0)),
            scratch_shapes=[pltpu.VMEM((cols, TQ, 128), jnp.float32)]),
        compiler_params=pltpu.CompilerParams(
            dimension_semantics=("parallel", "arbitrary"),
            vmem_limit_bytes=_VMEM_LIMIT),
    )(q16, qn, pt, base, bias)
    return out[:Pq, :cols]


def _attention_head_kernel(labr_ref, embr_ref, labp_ref, embp_ref, o_ref,
                           *, n_pix, epsilon):
    def pooled(lab, emb):
        # lab: (obj, P) {0,1} bf16, emb: (P, E) bf16 -- counts/totals computed in-kernel
        pos_sum = jnp.dot(lab, emb, preferred_element_type=jnp.float32)     # (obj, E)
        pos_cnt = jnp.sum(lab.astype(jnp.float32), axis=1, keepdims=True)   # (obj, 1)
        tot = jnp.sum(emb.astype(jnp.float32), axis=0, keepdims=True)       # (1, E)
        neg_sum = tot - pos_sum
        neg_cnt = float(n_pix) - pos_cnt
        return pos_sum / (pos_cnt + epsilon), neg_sum / (neg_cnt + epsilon)

    rp, rng = pooled(labr_ref[...], embr_ref[...])
    pp, png = pooled(labp_ref[...], embp_ref[...])
    o_ref[...] = jnp.concatenate([rp, rng, pp, png], axis=1)


def attention_head(ref_emb, ref_lab, prev_emb, prev_lab, epsilon):
    """ref_emb/prev_emb: (P, E) f32; ref_lab/prev_lab: (obj, P) {0,1}. Returns (obj, 4E)."""
    P, E = ref_emb.shape
    obj = ref_lab.shape[0]
    lab_r = ref_lab.astype(jnp.bfloat16)
    lab_p = prev_lab.astype(jnp.bfloat16)
    emb_r = ref_emb.astype(jnp.bfloat16)
    emb_p = prev_emb.astype(jnp.bfloat16)
    return pl.pallas_call(
        functools.partial(_attention_head_kernel, n_pix=P, epsilon=float(epsilon)),
        out_shape=jax.ShapeDtypeStruct((obj, 4 * E), jnp.float32),
        grid_spec=pltpu.PrefetchScalarGridSpec(
            num_scalar_prefetch=0, grid=(1,),
            in_specs=[pl.BlockSpec((obj, P), lambda i: (0, 0)),
                      pl.BlockSpec((P, E), lambda i: (0, 0)),
                      pl.BlockSpec((obj, P), lambda i: (0, 0)),
                      pl.BlockSpec((P, E), lambda i: (0, 0))],
            out_specs=pl.BlockSpec((obj, 4 * E), lambda i: (0, 0))),
        compiler_params=pltpu.CompilerParams(
            dimension_semantics=("arbitrary",), vmem_limit_bytes=_VMEM_LIMIT),
    )(lab_r, emb_r, lab_p, emb_p)


# ----------------------------------------------------------------------------
# Plain-JAX glue (reshapes, resizes, orchestration)
# ----------------------------------------------------------------------------
def avg_pool(x, s):
    n, c, h, w = x.shape
    return x.reshape(n, c, h // s, s, w // s, s).mean(axis=(3, 5))


def nearest_downscale_label(lab, stride):
    # matches F.interpolate(mode='nearest') for integer downscale factors
    return lab[..., ::stride, ::stride]


def resize_bilinear_align_corners(x, oh, ow):
    n, c, h, w = x.shape
    ys = jnp.linspace(0.0, h - 1.0, oh) if oh > 1 else jnp.zeros((oh,), jnp.float32)
    xs = jnp.linspace(0.0, w - 1.0, ow) if ow > 1 else jnp.zeros((ow,), jnp.float32)
    y0 = jnp.clip(jnp.floor(ys).astype(jnp.int32), 0, h - 1)
    x0 = jnp.clip(jnp.floor(xs).astype(jnp.int32), 0, w - 1)
    y1 = jnp.clip(y0 + 1, 0, h - 1)
    x1 = jnp.clip(x0 + 1, 0, w - 1)
    wy = (ys - y0.astype(jnp.float32))[None, None, :, None]
    wx = (xs - x0.astype(jnp.float32))[None, None, None, :]
    g = lambda yi, xi: x[:, :, yi, :][:, :, :, xi]
    top = g(y0, x0) * (1 - wx) + g(y0, x1) * wx
    bot = g(y1, x0) * (1 - wx) + g(y1, x1) * wx
    return top * (1 - wy) + bot * wy


def foreground2background(dis):
    obj = dis.shape[0]
    if obj == 1:
        return dis
    outs = []
    for i in range(obj):
        others = jnp.concatenate([dis[:i], dis[i + 1:]], axis=0)
        outs.append(jnp.min(others, axis=0, keepdims=True))
    return jnp.concatenate(outs, axis=0)


def nchw_to_rows(x):
    n, c, h, w = x.shape
    return jnp.transpose(x, (0, 2, 3, 1)).reshape(n * h * w, c), (n, h, w)


def rows_to_nchw(rows, nhw):
    n, h, w = nhw
    return jnp.transpose(rows.reshape(n, h, w, -1), (0, 3, 1, 2))


def extract_feature_standin(params, x):
    # TODO(synk): backbone feature_extracter + FPN are external; avg-pool + Pallas 1x1 conv.
    feats = []
    for s, stride in enumerate((4, 8, 16)):
        xp = avg_pool(x, stride)
        rows, nhw = nchw_to_rows(xp)
        proj = matmul_bias(rows, params[f"wp_{s}"], params[f"bp_{s}"], relu=True)
        feats.append(rows_to_nchw(proj, nhw))
    xl = avg_pool(x, 4)
    rows, nhw = nchw_to_rows(xl)
    low = rows_to_nchw(matmul_bias(rows, params["wlow"], params["blow"], relu=True), nhw)
    return feats[0], feats[1], feats[2], low


def seghead_standin(params, scale_feats, attn_heads, low_level):
    # TODO(synk): CollaborativeEnsemblerMS (GCT/GN/3x3 conv/IA gates) is external; deterministic
    # multi-scale 1x1-conv + attention-gated head; big matmuls run in Pallas.
    # The CE-input concat is evaluated as a split-K sum of per-source matmuls so the
    # obj-times broadcast of the embeddings is never materialized in HBM.
    obj = scale_feats[0]["obj"]
    H4, W4 = scale_feats[0]["h"], scale_feats[0]["w"]
    D = params["head_dim"]
    feat = None
    for s, (sf, ah) in enumerate(zip(scale_feats, attn_heads)):
        h, w = sf["h"], sf["w"]
        cm = sf["match_rows"].shape[1]
        E = sf["cur_rows"].shape[1]
        w1 = params[f"w1_{s}"]
        b1 = params[f"b1_{s}"]
        w_m = w1[:cm]
        w_c = w1[cm:cm + E]
        # fused fg/bg prev-embedding projection: one matmul (lane-denser output), and
        # prev_rows is streamed from HBM once instead of twice.
        w_fb = jnp.concatenate([w1[cm + E:cm + 2 * E], w1[cm + 2 * E:cm + 3 * E]], axis=1)
        y_m = matmul_bias(sf["match_rows"], w_m, b1)                         # (obj*h*w, D)
        y_c = matmul_bias(sf["cur_rows"], w_c, jnp.zeros((D,), jnp.float32))
        y_fb = matmul_bias(sf["prev_rows"], w_fb, jnp.zeros((2 * D,), jnp.float32))
        y_f, y_b = y_fb[:, :D], y_fb[:, D:]
        lab = sf["prev_lab"].reshape(obj, h * w, 1)
        hfeat = (y_m.reshape(obj, h * w, D) + y_c[None]
                 + lab * y_f[None] + (1.0 - lab) * y_b[None])
        hfeat = jnp.maximum(hfeat, 0.0).reshape(obj, h, w, D)
        # tiny (obj, 4E) @ (4E, D) gate matmul is left to XLA (too small for a pallas_call).
        gate = jax.nn.sigmoid(ah @ params[f"wa_{s}"] + params[f"ba_{s}"])
        hfeat = hfeat * gate[:, None, None, :]
        hfeat = jnp.repeat(jnp.repeat(hfeat, H4 // h, axis=1), W4 // w, axis=2)
        feat = hfeat if feat is None else feat + hfeat
    ll_rows, _ = nchw_to_rows(low_level)
    llf = matmul_bias(ll_rows, params["wl"], params["bl"], relu=True).reshape(1, H4, W4, D)
    feat = jnp.maximum(feat + llf, 0.0)
    # N=1 logits projection: masked-store worst case for a Pallas matmul; left to XLA as a
    # lane reduction.
    logits = jnp.einsum("phwd,d->phw", feat, params["wo"][:, 0]) + params["bo"][0]
    return logits[None]                                   # (1, obj, H4, W4)


def before_seghead_process(params, cfg, ref_embs, prev_embs, cur_embs,
                           ref_label, prev_mask, gt_ids, current_low_level):
    bs = cur_embs[0].shape[0]
    dic_tmp, boards = [], {}
    # NOTE: per-sample Python loop mirrors the PyTorch reference (per-sample obj_num);
    # gt_ids must be a host Python list of ints.
    for n in range(bs):
        obj_num = int(gt_ids[n]) + 1
        obj_ids = jnp.arange(obj_num, dtype=jnp.int32).reshape(obj_num, 1, 1, 1)
        scale_feats, all_AH = [], []
        for s in range(3):
            cur_e = cur_embs[s][n]
            ref_e = ref_embs[s][n]
            prev_e = prev_embs[s][n]
            E, h, w = cur_e.shape
            stride = ref_label.shape[-1] // w
            scale_ref_lab = nearest_downscale_label(ref_label[n], stride)     # (1, h, w)
            scale_prev_lab = nearest_downscale_label(prev_mask[n], stride)
            seq_ref_label = (scale_ref_lab.astype(jnp.int32) == obj_ids).astype(jnp.float32)
            seq_prev_label = (scale_prev_lab.astype(jnp.int32) == obj_ids).astype(jnp.float32)

            md = cfg["MATCHING_DIM"][s]
            q = jnp.transpose(cur_e[:md], (1, 2, 0)).reshape(h * w, md)
            r = jnp.transpose(ref_e[:md], (1, 2, 0)).reshape(h * w, md)
            p = jnp.transpose(prev_e[:md], (1, 2, 0)).reshape(h * w, md)
            ref_lab_t = seq_ref_label.reshape(obj_num, h * w)
            prev_lab_t = seq_prev_label.reshape(obj_num, h * w)

            if int(gt_ids[n]) > 0:
                dis_bias = jnp.concatenate(
                    [params["bg_bias"][s][None],
                     jnp.broadcast_to(params["fg_bias"][s][None],
                                      (int(gt_ids[n]), 1, 1, 1))], axis=0)
            else:
                dis_bias = params["bg_bias"][s][None]
            bias_row = dis_bias.reshape(1, obj_num)

            # ---- global matching (Pallas, deferred cross-lane reduce) ----
            g_rows = global_matching(q, r, ref_lab_t, bias_row, obj_num)      # (P, obj)
            g_fg = jnp.transpose(g_rows.reshape(h, w, obj_num), (2, 0, 1))[:, None]

            # ---- local matching (Pallas, in-kernel masks, band-limited ref axis) ----
            mld = tuple(cfg["MLD"][s])
            nd = len(mld)
            bias_loc = jnp.repeat(dis_bias.reshape(obj_num), nd).reshape(1, obj_num * nd)
            l_rows = local_matching(q, p, prev_lab_t, mld, bias_loc, obj_num, w)
            l_fg = jnp.transpose(l_rows.reshape(h, w, obj_num, nd), (2, 3, 0, 1))

            small = [g_fg, l_fg, seq_prev_label]
            if cfg["MATCHING_BACKGROUND"]:
                small += [foreground2background(l_fg), foreground2background(g_fg)]
            small = jnp.concatenate(small, axis=1)                            # (obj, cm, h, w)
            match_rows = jnp.transpose(small, (0, 2, 3, 1)).reshape(
                obj_num * h * w, small.shape[1])

            cur_rows = jnp.transpose(cur_e, (1, 2, 0)).reshape(h * w, E)
            prev_rows = jnp.transpose(prev_e, (1, 2, 0)).reshape(h * w, E)
            ref_rows = jnp.transpose(ref_e, (1, 2, 0)).reshape(h * w, E)

            # ---- attention head (Pallas, fused pooling matmul, no ones-concat) ----
            ah = attention_head(ref_rows, ref_lab_t, prev_rows, prev_lab_t, cfg["EPSILON"])

            scale_feats.append(dict(match_rows=match_rows, cur_rows=cur_rows,
                                    prev_rows=prev_rows, prev_lab=prev_lab_t,
                                    h=h, w=w, obj=obj_num))
            all_AH.append(ah)
        dic_tmp.append(seghead_standin(params, scale_feats, all_AH,
                                       current_low_level[n:n + 1]))
    return dic_tmp, boards


def cfbip_forward(params, cfg, inputs, ref_frame_label, previous_frame_mask,
                  current_frame_mask, gt_ids):
    x4, x8, x16, low = extract_feature_standin(params, inputs)
    bs = low.shape[0] // 3
    split = lambda a: (a[:bs], a[bs:2 * bs], a[2 * bs:])
    r4, p4, c4 = split(x4)
    r8, p8, c8 = split(x8)
    r16, p16, c16 = split(x16)
    _, _, cur_low = split(low)

    tmp_dic, boards = before_seghead_process(
        params, cfg, [r4, r8, r16], [p4, p8, p16], [c4, c8, c16],
        ref_frame_label, previous_frame_mask, gt_ids, cur_low)

    H, W = inputs.shape[2], inputs.shape[3]
    all_pred, losses = [], []
    for i in range(bs):
        logits = resize_bilinear_align_corners(tmp_dic[i], H, W)   # (1, obj, H, W)
        all_pred.append(jnp.argmax(logits, axis=1))
        # TODO(synk): Concat_CrossEntropyLoss with top-k hard pixel mining is external; plain CE.
        logp = jax.nn.log_softmax(logits, axis=1)
        lab = current_frame_mask[i, 0].astype(jnp.int32)
        picked = jnp.take_along_axis(logp[0], lab[None], axis=0)[0]
        losses.append(-jnp.mean(picked))
    all_pred = jnp.concatenate(all_pred, axis=0)
    loss = jnp.stack(losses).mean()
    return loss, all_pred, boards


# ----------------------------------------------------------------------------
# Config + deterministic parameter init
# ----------------------------------------------------------------------------
CFG = dict(
    EMB=32,                 # MODEL_SEMANTIC_EMBEDDING_DIM
    HEAD_DIM=32,            # MODEL_HEAD_EMBEDDING_DIM (stand-in)
    LOW_DIM=16,             # MODEL_LOW_LEVEL_INPLANES (stand-in)
    MATCHING_DIM=[32, 32, 32],
    MLD=[[4, 8], [2, 4], [1, 2]],   # MODEL_MULTI_LOCAL_DISTANCE
    MATCHING_BACKGROUND=True,
    EPSILON=1e-5,
)


def init_params(key, cfg):
    E, D, LOW = cfg["EMB"], cfg["HEAD_DIM"], cfg["LOW_DIM"]
    keys = iter(jax.random.split(key, 32))

    def kaiming(shape):
        fan_out = shape[-1]
        return jax.random.normal(next(keys), shape, jnp.float32) * math.sqrt(2.0 / fan_out)

    p = {}
    for s in range(3):
        p[f"wp_{s}"] = kaiming((3, E))
        p[f"bp_{s}"] = jnp.zeros((E,), jnp.float32)
        cin = 3 * E + 3 + 2 * len(cfg["MLD"][s])
        p[f"w1_{s}"] = kaiming((cin, D))
        p[f"b1_{s}"] = jnp.zeros((D,), jnp.float32)
        p[f"wa_{s}"] = kaiming((4 * E, D))
        p[f"ba_{s}"] = jnp.zeros((D,), jnp.float32)
    p["wlow"] = kaiming((3, LOW))
    p["blow"] = jnp.zeros((LOW,), jnp.float32)
    p["wl"] = kaiming((LOW, D))
    p["bl"] = jnp.zeros((D,), jnp.float32)
    p["wo"] = kaiming((D, 1))
    p["bo"] = jnp.zeros((1,), jnp.float32)
    p["bg_bias"] = jnp.zeros((3, 1, 1, 1), jnp.float32)   # nn.Parameter(torch.zeros(3,1,1,1))
    p["fg_bias"] = jnp.zeros((3, 1, 1, 1), jnp.float32)
    p["head_dim"] = D
    return p


if __name__ == "__main__":
    key = jax.random.PRNGKey(0)
    k_in, k_ref, k_prev, k_cur, k_par = jax.random.split(key, 5)

    H = W = 64
    bs = 1
    # input holds [ref | prev | current] frames stacked along batch dim (torch.split order)
    inputs = jax.random.normal(k_in, (3 * bs, 3, H, W), jnp.float32)
    ref_frame_label = jax.random.randint(k_ref, (bs, 1, H, W), 0, 3).astype(jnp.int32)
    previous_frame_mask = jax.random.randint(k_prev, (bs, 1, H, W), 0, 3).astype(jnp.int32)
    current_frame_mask = jax.random.randint(k_cur, (bs, 1, H, W), 0, 3).astype(jnp.int32)
    gt_ids = [2]   # 2 foreground objects + background -> obj_num = 3

    params = init_params(k_par, CFG)
    loss, all_pred, boards = cfbip_forward(
        params, CFG, inputs, ref_frame_label, previous_frame_mask,
        current_frame_mask, gt_ids)

    jax.block_until_ready(loss)
    jax.block_until_ready(all_pred)
    assert all_pred.shape == (bs, H, W)
    print("KERNEL_OK")
</pallas_src>

<mosaic_0001>
module attributes {stable_mosaic.version = 11 : i64} {
  func.func @_matmul_bias_kernel(%arg0: i32, %arg1: memref<768x3xf32, #tpu.memory_space<vmem>>, %arg2: memref<3x32xf32, #tpu.memory_space<vmem>>, %arg3: memref<1x32xf32, #tpu.memory_space<vmem>>, %arg4: memref<768x32xf32, #tpu.memory_space<vmem>>) attributes {dimension_semantics = [#tpu.dimension_semantics<parallel>], iteration_bounds = array<i64: 1>, scalar_prefetch = 0 : i64, scratch_operands = 0 : i64, tpu.core_type = #tpu.core_type<tc>, window_params = [{transform_indices = @transform_0, window_bounds = array<i64: 768, 3>}, {pipeline_mode = #tpu.pipeline_mode<synchronous>, transform_indices = @transform_1, window_bounds = array<i64: 3, 32>}, {pipeline_mode = #tpu.pipeline_mode<synchronous>, transform_indices = @transform_2, window_bounds = array<i64: 1, 32>}, {transform_indices = @transform_3, window_bounds = array<i64: 768, 32>}]} {
    %c0 = arith.constant 0 : index
    %c0_0 = arith.constant 0 : index
    %0 = vector.load %arg1[%c0, %c0_0] : memref<768x3xf32, #tpu.memory_space<vmem>>, vector<768x3xf32>
    %c0_1 = arith.constant 0 : index
    %c0_2 = arith.constant 0 : index
    %1 = vector.load %arg2[%c0_1, %c0_2] : memref<3x32xf32, #tpu.memory_space<vmem>>, vector<3x32xf32>
    %cst = arith.constant dense<0.000000e+00> : vector<768x32xf32>
    %2 = tpu.matmul %0, %1, %cst {dimension_numbers = #tpu.dot_dimension_numbers<[1], [0], [0], [1], [0, 0, 1, 1], [], []>} : vector<768x3xf32>, vector<3x32xf32>, vector<768x32xf32> -> vector<768x32xf32>
    %c0_3 = arith.constant 0 : index
    %c0_4 = arith.constant 0 : index
    %3 = vector.load %arg3[%c0_3, %c0_4] : memref<1x32xf32, #tpu.memory_space<vmem>>, vector<1x32xf32>
    %4 = vector.broadcast %3 : vector<1x32xf32> to vector<768x32xf32>
    %5 = arith.addf %2, %4 : vector<768x32xf32>
    %cst_5 = arith.constant 0.000000e+00 : f32
    %6 = vector.broadcast %cst_5 : f32 to vector<768x32xf32>
    %7 = arith.maximumf %5, %6 : vector<768x32xf32>
    %c0_6 = arith.constant 0 : index
    %c0_7 = arith.constant 0 : index
    %8 = vector.load %arg4[%c0_6, %c0_7] : memref<768x32xf32, #tpu.memory_space<vmem>>, vector<768x32xf32>
    tpu.vector_store %arg4[%c0_6, %c0_7], %7 {strides = array<i32>} : memref<768x32xf32, #tpu.memory_space<vmem>>, vector<768x32xf32>,
    return
  }
  func.func @transform_0(%arg0: i32) -> (i32, i32) {
    %c0_i32 = arith.constant 0 : i32
    %c0_i32_0 = arith.constant 0 : i32
    return %arg0, %c0_i32 : i32, i32
  }
  func.func @transform_1(%arg0: i32) -> (i32, i32) {
    %c0_i32 = arith.constant 0 : i32
    %c0_i32_0 = arith.constant 0 : i32
    %c0_i32_1 = arith.constant 0 : i32
    return %c0_i32, %c0_i32_0 : i32, i32
  }
  func.func @transform_2(%arg0: i32) -> (i32, i32) {
    %c0_i32 = arith.constant 0 : i32
    %c0_i32_0 = arith.constant 0 : i32
    %c0_i32_1 = arith.constant 0 : i32
    return %c0_i32, %c0_i32_0 : i32, i32
  }
  func.func @transform_3(%arg0: i32) -> (i32, i32) {
    %c0_i32 = arith.constant 0 : i32
    %c0_i32_0 = arith.constant 0 : i32
    return %arg0, %c0_i32 : i32, i32
  }
}

</mosaic_0001>

<llo_original>
// kernel: tpu_custom_call.1
$region0: #{tpu_custom_call.1}
  #allocation0 [shape = 'u32[]', space=smem, size = 0x4, offset = 0x4, fixed_abs, tag = 'smem constant byte address 0x4 - core index']
  #allocation1 [shape = 'u32[144,128]{1,0:T(1,128)}', space=vmem, size = 0x12000, scoped, tag = 'internal scratch']
  %s0 = inlined_call_operand.vmem [shape: f32[768,3], index: 0, kind: input, shape index: {}]
  %s1 = inlined_call_operand.vmem [shape: f32[3,32], index: 1, kind: input, shape index: {}]
  %s2 = inlined_call_operand.vmem [shape: f32[1,32], index: 2, kind: input, shape index: {}]
  %s3 = inlined_call_operand.vmem [shape: f32[768,32], index: 3, kind: output, shape index: {}]
  %s4 = sld [smem:[#allocation0]]
  $region22: #{tpu_custom_call.1} parent=0
    _
  %s6 = ssub.s32 1, %s4
  %s7 = scalar_select 0, %s6, %s4
  // Predicated region
  $region2: #{tpu_custom_call.1} parent=0 // pred_check
    _
  $region3: #{tpu_custom_call.1} parent=0 // pred_check_branch
    %9 = sbr.rel (0) target = $region5
  $region4: #{tpu_custom_call.1} parent=0 // pred_region
    _
  $region5: #{tpu_custom_call.1} parent=0 // pred_fallthru
    _
  // Predicated region
  $region6: #{tpu_custom_call.1} parent=0 // pred_check
    _
  $region7: #{tpu_custom_call.1} parent=0 // pred_check_branch
    %11 = sbr.rel (0) target = $region9
  $region8: #{tpu_custom_call.1} parent=0 // pred_region
    _
  $region9: #{tpu_custom_call.1} parent=0 // pred_fallthru
    _
  // Predicated region
  $region10: #{tpu_custom_call.1} parent=0 // pred_check
    _
  $region11: #{tpu_custom_call.1} parent=0 // pred_check_branch
    %13 = sbr.rel (0) target = $region13
  $region12: #{tpu_custom_call.1} parent=0 // pred_region
    _
  $region13: #{tpu_custom_call.1} parent=0 // pred_fallthru
    _
  %v14 = vld [vmem:[%s0] sm:$0xff]
  %v15 = vld [vmem:[%s0 + $0x8] sm:$0xff]
  %v16 = vld [vmem:[%s0 + $0x10] sm:$0xff]
  %v17 = vld [vmem:[%s0 + $0x18] sm:$0xff]
  %v18 = vld [vmem:[%s0 + $0x20] sm:$0xff]
  %v19 = vld [vmem:[%s0 + $0x28] sm:$0xff]
  %v20 = vld [vmem:[%s0 + $0x30] sm:$0xff]
  %v21 = vld [vmem:[%s0 + $0x38] sm:$0xff]
  %v22 = vld [vmem:[%s0 + $0x40] sm:$0xff]
  %v23 = vld [vmem:[%s0 + $0x48] sm:$0xff]
  %v24 = vld [vmem:[%s0 + $0x50] sm:$0xff]
  %v25 = vld [vmem:[%s0 + $0x58] sm:$0xff]
  %v26 = vld [vmem:[%s0 + $0x60] sm:$0xff]
  %v27 = vld [vmem:[%s0 + $0x68] sm:$0xff]
  %v28 = vld [vmem:[%s0 + $0x70] sm:$0xff]
  %v29 = vld [vmem:[%s0 + $0x78] sm:$0xff]
  %v30 = vld [vmem:[%s0 + $0x80] sm:$0xff]
  %v31 = vld [vmem:[%s0 + $0x88] sm:$0xff]
  %v32 = vld [vmem:[%s0 + $0x90] sm:$0xff]
  %v33 = vld [vmem:[%s0 + $0x98] sm:$0xff]
  %v34 = vld [vmem:[%s0 + $0xa0] sm:$0xff]
  %v35 = vld [vmem:[%s0 + $0xa8] sm:$0xff]
  %v36 = vld [vmem:[%s0 + $0xb0] sm:$0xff]
  %v37 = vld [vmem:[%s0 + $0xb8] sm:$0xff]
  %v38 = vld [vmem:[%s0 + $0xc0] sm:$0xff]
  %v39 = vld [vmem:[%s0 + $0xc8] sm:$0xff]
  %v40 = vld [vmem:[%s0 + $0xd0] sm:$0xff]
  %v41 = vld [vmem:[%s0 + $0xd8] sm:$0xff]
  %v42 = vld [vmem:[%s0 + $0xe0] sm:$0xff]
  %v43 = vld [vmem:[%s0 + $0xe8] sm:$0xff]
  %v44 = vld [vmem:[%s0 + $0xf0] sm:$0xff]
  %v45 = vld [vmem:[%s0 + $0xf8] sm:$0xff]
  %v46 = vld [vmem:[%s0 + $0x100] sm:$0xff]
  %v47 = vld [vmem:[%s0 + $0x108] sm:$0xff]
  %v48 = vld [vmem:[%s0 + $0x110] sm:$0xff]
  %v49 = vld [vmem:[%s0 + $0x118] sm:$0xff]
  %v50 = vld [vmem:[%s0 + $0x120] sm:$0xff]
  %v51 = vld [vmem:[%s0 + $0x128] sm:$0xff]
  %v52 = vld [vmem:[%s0 + $0x130] sm:$0xff]
  %v53 = vld [vmem:[%s0 + $0x138] sm:$0xff]
  %v54 = vld [vmem:[%s0 + $0x140] sm:$0xff]
  %v55 = vld [vmem:[%s0 + $0x148] sm:$0xff]
  %v56 = vld [vmem:[%s0 + $0x150] sm:$0xff]
  %v57 = vld [vmem:[%s0 + $0x158] sm:$0xff]
  %v58 = vld [vmem:[%s0 + $0x160] sm:$0xff]
  %v59 = vld [vmem:[%s0 + $0x168] sm:$0xff]
  %v60 = vld [vmem:[%s0 + $0x170] sm:$0xff]
  %v61 = vld [vmem:[%s0 + $0x178] sm:$0xff]
  %v62 = vld [vmem:[%s0 + $0x180] sm:$0xff]
  %v63 = vld [vmem:[%s0 + $0x188] sm:$0xff]
  %v64 = vld [vmem:[%s0 + $0x190] sm:$0xff]
  %v65 = vld [vmem:[%s0 + $0x198] sm:$0xff]
  %v66 = vld [vmem:[%s0 + $0x1a0] sm:$0xff]
  %v67 = vld [vmem:[%s0 + $0x1a8] sm:$0xff]
  %v68 = vld [vmem:[%s0 + $0x1b0] sm:$0xff]
  %v69 = vld [vmem:[%s0 + $0x1b8] sm:$0xff]
  %v70 = vld [vmem:[%s0 + $0x1c0] sm:$0xff]
  %v71 = vld [vmem:[%s0 + $0x1c8] sm:$0xff]
  %v72 = vld [vmem:[%s0 + $0x1d0] sm:$0xff]
  %v73 = vld [vmem:[%s0 + $0x1d8] sm:$0xff]
  %v74 = vld [vmem:[%s0 + $0x1e0] sm:$0xff]
  %v75 = vld [vmem:[%s0 + $0x1e8] sm:$0xff]
  %v76 = vld [vmem:[%s0 + $0x1f0] sm:$0xff]
  %v77 = vld [vmem:[%s0 + $0x1f8] sm:$0xff]
  %v78 = vld [vmem:[%s0 + $0x200] sm:$0xff]
  %v79 = vld [vmem:[%s0 + $0x208] sm:$0xff]
  %v80 = vld [vmem:[%s0 + $0x210] sm:$0xff]
  %v81 = vld [vmem:[%s0 + $0x218] sm:$0xff]
  %v82 = vld [vmem:[%s0 + $0x220] sm:$0xff]
  %v83 = vld [vmem:[%s0 + $0x228] sm:$0xff]
  %v84 = vld [vmem:[%s0 + $0x230] sm:$0xff]
  %v85 = vld [vmem:[%s0 + $0x238] sm:$0xff]
  %v86 = vld [vmem:[%s0 + $0x240] sm:$0xff]
  %v87 = vld [vmem:[%s0 + $0x248] sm:$0xff]
  %v88 = vld [vmem:[%s0 + $0x250] sm:$0xff]
  %v89 = vld [vmem:[%s0 + $0x258] sm:$0xff]
  %v90 = vld [vmem:[%s0 + $0x260] sm:$0xff]
  %v91 = vld [vmem:[%s0 + $0x268] sm:$0xff]
  %v92 = vld [vmem:[%s0 + $0x270] sm:$0xff]
  %v93 = vld [vmem:[%s0 + $0x278] sm:$0xff]
  %v94 = vld [vmem:[%s0 + $0x280] sm:$0xff]
  %v95 = vld [vmem:[%s0 + $0x288] sm:$0xff]
  %v96 = vld [vmem:[%s0 + $0x290] sm:$0xff]
  %v97 = vld [vmem:[%s0 + $0x298] sm:$0xff]
  %v98 = vld [vmem:[%s0 + $0x2a0] sm:$0xff]
  %v99 = vld [vmem:[%s0 + $0x2a8] sm:$0xff]
  %v100 = vld [vmem:[%s0 + $0x2b0] sm:$0xff]
  %v101 = vld [vmem:[%s0 + $0x2b8] sm:$0xff]
  %v102 = vld [vmem:[%s0 + $0x2c0] sm:$0xff]
  %v103 = vld [vmem:[%s0 + $0x2c8] sm:$0xff]
  %v104 = vld [vmem:[%s0 + $0x2d0] sm:$0xff]
  %v105 = vld [vmem:[%s0 + $0x2d8] sm:$0xff]
  %v106 = vld [vmem:[%s0 + $0x2e0] sm:$0xff]
  %v107 = vld [vmem:[%s0 + $0x2e8] sm:$0xff]
  %v108 = vld [vmem:[%s0 + $0x2f0] sm:$0xff]
  %v109 = vld [vmem:[%s0 + $0x2f8] sm:$0xff]
  %v110 = vld [vmem:[%s1] sm:$0x7]
  %v111 = vld [vmem:[%s2] sm:$0x1]
  %v113 = vlaneseq
  %v114 = vshrl.u32 %v113, 7
  %v115 = vsub.s32 0, %v114
  %v116 = vrot.slane %v111, %v115
  %vm118 = vcmask 23552
  %v120 = vsel %vm118, %v14, 0
  %v123 = vsel %vm118, %v15, 0
  %v126 = vsel %vm118, %v16, 0
  %v129 = vsel %vm118, %v17, 0
  %v132 = vsel %vm118, %v18, 0
  %v135 = vsel %vm118, %v19, 0
  %v138 = vsel %vm118, %v20, 0
  %v141 = vsel %vm118, %v21, 0
  %v144 = vsel %vm118, %v22, 0
  %v147 = vsel %vm118, %v23, 0
  %v150 = vsel %vm118, %v24, 0
  %v153 = vsel %vm118, %v25, 0
  %v156 = vsel %vm118, %v26, 0
  %v159 = vsel %vm118, %v27, 0
  %v162 = vsel %vm118, %v28, 0
  %v165 = vsel %vm118, %v29, 0
  %v168 = vsel %vm118, %v30, 0
  %v171 = vsel %vm118, %v31, 0
  %v174 = vsel %vm118, %v32, 0
  %v177 = vsel %vm118, %v33, 0
  %v180 = vsel %vm118, %v34, 0
  %v183 = vsel %vm118, %v35, 0
  %v186 = vsel %vm118, %v36, 0
  %v189 = vsel %vm118, %v37, 0
  %v192 = vsel %vm118, %v38, 0
  %v195 = vsel %vm118, %v39, 0
  %v198 = vsel %vm118, %v40, 0
  %v201 = vsel %vm118, %v41, 0
  %v204 = vsel %vm118, %v42, 0
  %v207 = vsel %vm118, %v43, 0
  %v210 = vsel %vm118, %v44, 0
  %v213 = vsel %vm118, %v45, 0
  %v216 = vsel %vm118, %v46, 0
  %v219 = vsel %vm118, %v47, 0
  %v222 = vsel %vm118, %v48, 0
  %v225 = vsel %vm118, %v49, 0
  %v228 = vsel %vm118, %v50, 0
  %v231 = vsel %vm118, %v51, 0
  %v234 = vsel %vm118, %v52, 0
  %v237 = vsel %vm118, %v53, 0
  %v240 = vsel %vm118, %v54, 0
  %v243 = vsel %vm118, %v55, 0
  %v246 = vsel %vm118, %v56, 0
  %v249 = vsel %vm118, %v57, 0
  %v252 = vsel %vm118, %v58, 0
  %v255 = vsel %vm118, %v59, 0
  %v258 = vsel %vm118, %v60, 0
  %v261 = vsel %vm118, %v61, 0
  %v264 = vsel %vm118, %v62, 0
  %v267 = vsel %vm118, %v63, 0
  %v270 = vsel %vm118, %v64, 0
  %v273 = vsel %vm118, %v65, 0
  %v276 = vsel %vm118, %v66, 0
  %v279 = vsel %vm118, %v67, 0
  %v282 = vsel %vm118, %v68, 0
  %v285 = vsel %vm118, %v69, 0
  %v288 = vsel %vm118, %v70, 0
  %v291 = vsel %vm118, %v71, 0
  %v294 = vsel %vm118, %v72, 0
  %v297 = vsel %vm118, %v73, 0
  %v300 = vsel %vm118, %v74, 0
  %v303 = vsel %vm118, %v75, 0
  %v306 = vsel %vm118, %v76, 0
  %v309 = vsel %vm118, %v77, 0
  %v312 = vsel %vm118, %v78, 0
  %v315 = vsel %vm118, %v79, 0
  %v318 = vsel %vm118, %v80, 0
  %v321 = vsel %vm118, %v81, 0
  %v324 = vsel %vm118, %v82, 0
  %v327 = vsel %vm118, %v83, 0
  %v330 = vsel %vm118, %v84, 0
  %v333 = vsel %vm118, %v85, 0
  %v336 = vsel %vm118, %v86, 0
  %v339 = vsel %vm118, %v87, 0
  %v342 = vsel %vm118, %v88, 0
  %v345 = vsel %vm118, %v89, 0
  %v348 = vsel %vm118, %v90, 0
  %v351 = vsel %vm118, %v91, 0
  %v354 = vsel %vm118, %v92, 0
  %v357 = vsel %vm118, %v93, 0
  %v360 = vsel %vm118, %v94, 0
  %v363 = vsel %vm118, %v95, 0
  %v366 = vsel %vm118, %v96, 0
  %v369 = vsel %vm118, %v97, 0
  %v372 = vsel %vm118, %v98, 0
  %v375 = vsel %vm118, %v99, 0
  %v378 = vsel %vm118, %v100, 0
  %v381 = vsel %vm118, %v101, 0
  %v384 = vsel %vm118, %v102, 0
  %v387 = vsel %vm118, %v103, 0
  %v390 = vsel %vm118, %v104, 0
  %v393 = vsel %vm118, %v105, 0
  %v396 = vsel %vm118, %v106, 0
  %v399 = vsel %vm118, %v107, 0
  %v402 = vsel %vm118, %v108, 0
  %v405 = vsel %vm118, %v109, 0
  %vm407 = vcmask 1042432
  %v409 = vsel %vm407, %v110, 0
  %411 = vmatprep.subr.mxu0 0.0
  %412 = vmatpush1.msra.mxu0 %v409
  %413 = vmatprep.subr.mxu0 0.0
  %414 = vmatpush1.msra.mxu0 0.0
  %415 = vmatprep.subr.mxu0 0.0
  %416 = vmatpush1.msra.mxu0 0.0
  %417 = vmatprep.subr.mxu0 0.0
  %418 = vmatpush1.msra.mxu0 0.0
  %419 = vmatprep.subr.mxu0 0.0
  %420 = vmatpush1.msra.mxu0 0.0
  %421 = vmatprep.subr.mxu0 0.0
  %422 = vmatpush1.msra.mxu0 0.0
  %423 = vmatprep.subr.mxu0 0.0
  %424 = vmatpush1.msra.mxu0 0.0
  %425 = vmatprep.subr.mxu0 0.0
  %426 = vmatpush1.msra.mxu0 0.0
  %427 = vmatprep.subr.mxu0 0.0
  %428 = vmatpush1.msra.mxu0 0.0
  %429 = vmatprep.subr.mxu0 0.0
  %430 = vmatpush1.msra.mxu0 0.0
  %431 = vmatprep.subr.mxu0 0.0
  %432 = vmatpush1.msra.mxu0 0.0
  %433 = vmatprep.subr.mxu0 0.0
  %434 = vmatpush1.msra.mxu0 0.0
  %435 = vmatprep.subr.mxu0 0.0
  %436 = vmatpush1.msra.mxu0 0.0
  %437 = vmatprep.subr.mxu0 0.0
  %438 = vmatpush1.msra.mxu0 0.0
  %439 = vmatprep.subr.mxu0 0.0
  %440 = vmatpush1.msra.mxu0 0.0
  %441 = vmatprep.subr.mxu0 0.0
  %442 = vmatpush1.msra.mxu0 0.0
  %443 = vmatprep.subr.mxu0 0.0
  %444 = vmatpush1.msra.mxu0 0.0
  %445 = vmatprep.subr.mxu0 0.0
  %446 = vmatpush1.msra.mxu0 0.0
  %447 = vmatprep.subr.mxu0 0.0
  %448 = vmatpush1.msra.mxu0 0.0
  %449 = vmatprep.subr.mxu0 0.0
  %450 = vmatpush1.msra.mxu0 0.0
  %451 = vmatprep.subr.mxu0 0.0
  %452 = vmatpush1.msra.mxu0 0.0
  %453 = vmatprep.subr.mxu0 0.0
  %454 = vmatpush1.msra.mxu0 0.0
  %455 = vmatprep.subr.mxu0 0.0
  %456 = vmatpush1.msra.mxu0 0.0
  %457 = vmatprep.subr.mxu0 0.0
  %458 = vmatpush1.msra.mxu0 0.0
  %459 = vmatprep.subr.mxu0 0.0
  %460 = vmatpush1.msra.mxu0 0.0
  %461 = vmatprep.subr.mxu0 0.0
  %462 = vmatpush1.msra.mxu0 0.0
  %463 = vmatprep.subr.mxu0 0.0
  %464 = vmatpush1.msra.mxu0 0.0
  %465 = vmatprep.subr.mxu0 0.0
  %466 = vmatpush1.msra.mxu0 0.0
  %467 = vmatprep.subr.mxu0 0.0
  %468 = vmatpush1.msra.mxu0 0.0
  %469 = vmatprep.subr.mxu0 0.0
  %470 = vmatpush1.msra.mxu0 0.0
  %471 = vmatprep.subr.mxu0 0.0
  %472 = vmatpush1.msra.mxu0 0.0
  %473 = vmatprep.subr.mxu0 0.0
  %474 = vmatpush1.msra.mxu0 0.0
  %475 = vmatprep.mubr.f32.mxu0 0.0
  %476 = vmatmul.mubr.f32.gmra.mrb[0].mxu0 %v120
  %v477 = vpop.f32.mrb[0].mxu0
  %v478 = vadd.f32 %v116, %v477
  %v479 = vpop.f32.mrb[0].mxu0
  %480 = vmatprep.mubr.f32.mxu0 0.0
  %481 = vmatmul.mubr.f32.gmra.mrb[0].mxu0 %v123
  %v482 = vpop.f32.mrb[0].mxu0
  %v483 = vadd.f32 %v116, %v482
  %v484 = vpop.f32.mrb[0].mxu0
  %485 = vmatprep.mubr.f32.mxu0 0.0
  %486 = vmatmul.mubr.f32.gmra.mrb[0].mxu0 %v126
  %v487 = vpop.f32.mrb[0].mxu0
  %v488 = vadd.f32 %v116, %v487
  %v489 = vpop.f32.mrb[0].mxu0
  %490 = vmatprep.mubr.f32.mxu0 0.0
  %491 = vmatmul.mubr.f32.gmra.mrb[0].mxu0 %v129
  %v492 = vpop.f32.mrb[0].mxu0
  %v493 = vadd.f32 %v116, %v492
  %v494 = vpop.f32.mrb[0].mxu0
  %495 = vmatprep.mubr.f32.mxu0 0.0
  %496 = vmatmul.mubr.f32.gmra.mrb[0].mxu0 %v132
  %v497 = vpop.f32.mrb[0].mxu0
  %v498 = vadd.f32 %v116, %v497
  %v499 = vpop.f32.mrb[0].mxu0
  %500 = vmatprep.mubr.f32.mxu0 0.0
  %501 = vmatmul.mubr.f32.gmra.mrb[0].mxu0 %v135
  %v502 = vpop.f32.mrb[0].mxu0
  %v503 = vadd.f32 %v116, %v502
  %v504 = vpop.f32.mrb[0].mxu0
  %505 = vmatprep.mubr.f32.mxu0 0.0
  %506 = vmatmul.mubr.f32.gmra.mrb[0].mxu0 %v138
  %v507 = vpop.f32.mrb[0].mxu0
  %v508 = vadd.f32 %v116, %v507
  %v509 = vpop.f32.mrb[0].mxu0
  %510 = vmatprep.mubr.f32.mxu0 0.0
  %511 = vmatmul.mubr.f32.gmra.mrb[0].mxu0 %v141
  %v512 = vpop.f32.mrb[0].mxu0
  %v513 = vadd.f32 %v116, %v512
  %v514 = vpop.f32.mrb[0].mxu0
  %515 = vmatprep.mubr.f32.mxu0 0.0
  %516 = vmatmul.mubr.f32.gmra.mrb[0].mxu0 %v144
  %v517 = vpop.f32.mrb[0].mxu0
  %v518 = vadd.f32 %v116, %v517
  %v519 = vpop.f32.mrb[0].mxu0
  %520 = vmatprep.mubr.f32.mxu0 0.0
  %521 = vmatmul.mubr.f32.gmra.mrb[0].mxu0 %v147
  %v522 = vpop.f32.mrb[0].mxu0
  %v523 = vadd.f32 %v116, %v522
  %v524 = vpop.f32.mrb[0].mxu0
  %525 = vmatprep.mubr.f32.mxu0 0.0
  %526 = vmatmul.mubr.f32.gmra.mrb[0].mxu0 %v150
  %v527 = vpop.f32.mrb[0].mxu0
  %v528 = vadd.f32 %v116, %v527
  %v529 = vpop.f32.mrb[0].mxu0
  %530 = vmatprep.mubr.f32.mxu0 0.0
  %531 = vmatmul.mubr.f32.gmra.mrb[0].mxu0 %v153
  %v532 = vpop.f32.mrb[0].mxu0
  %v533 = vadd.f32 %v116, %v532
  %v534 = vpop.f32.mrb[0].mxu0
  %535 = vmatprep.mubr.f32.mxu0 0.0
  %536 = vmatmul.mubr.f32.gmra.mrb[0].mxu0 %v156
  %v537 = vpop.f32.mrb[0].mxu0
  %v538 = vadd.f32 %v116, %v537
  %v539 = vpop.f32.mrb[0].mxu0
  %540 = vmatprep.mubr.f32.mxu0 0.0
  %541 = vmatmul.mubr.f32.gmra.mrb[0].mxu0 %v159
  %v542 = vpop.f32.mrb[0].mxu0
  %v543 = vadd.f32 %v116, %v542
  %v544 = vpop.f32.mrb[0].mxu0
  %545 = vmatprep.mubr.f32.mxu0 0.0
  %546 = vmatmul.mubr.f32.gmra.mrb[0].mxu0 %v162
  %v547 = vpop.f32.mrb[0].mxu0
  %v548 = vadd.f32 %v116, %v547
  %v549 = vpop.f32.mrb[0].mxu0
  %550 = vmatprep.mubr.f32.mxu0 0.0
  %551 = vmatmul.mubr.f32.gmra.mrb[0].mxu0 %v165
  %v552 = vpop.f32.mrb[0].mxu0
  %v553 = vadd.f32 %v116, %v552
  %v554 = vpop.f32.mrb[0].mxu0
  %555 = vmatprep.mubr.f32.mxu0 0.0
  %556 = vmatmul.mubr.f32.gmra.mrb[0].mxu0 %v168
  %v557 = vpop.f32.mrb[0].mxu0
  %v558 = vadd.f32 %v116, %v557
  %v559 = vpop.f32.mrb[0].mxu0
  %560 = vmatprep.mubr.f32.mxu0 0.0
  %561 = vmatmul.mubr.f32.gmra.mrb[0].mxu0 %v171
  %v562 = vpop.f32.mrb[0].mxu0
  %v563 = vadd.f32 %v116, %v562
  %v564 = vpop.f32.mrb[0].mxu0
  %565 = vmatprep.mubr.f32.mxu0 0.0
  %566 = vmatmul.mubr.f32.gmra.mrb[0].mxu0 %v174
  %v567 = vpop.f32.mrb[0].mxu0
  %v568 = vadd.f32 %v116, %v567
  %v569 = vpop.f32.mrb[0].mxu0
  %570 = vmatprep.mubr.f32.mxu0 0.0
  %571 = vmatmul.mubr.f32.gmra.mrb[0].mxu0 %v177
  %v572 = vpop.f32.mrb[0].mxu0
  %v573 = vadd.f32 %v116, %v572
  %v574 = vpop.f32.mrb[0].mxu0
  %575 = vmatprep.mubr.f32.mxu0 0.0
  %576 = vmatmul.mubr.f32.gmra.mrb[0].mxu0 %v180
  %v577 = vpop.f32.mrb[0].mxu0
  %v578 = vadd.f32 %v116, %v577
  %v579 = vpop.f32.mrb[0].mxu0
  %580 = vmatprep.mubr.f32.mxu0 0.0
  %581 = vmatmul.mubr.f32.gmra.mrb[0].mxu0 %v183
  %v582 = vpop.f32.mrb[0].mxu0
  %v583 = vadd.f32 %v116, %v582
  %v584 = vpop.f32.mrb[0].mxu0
  %585 = vmatprep.mubr.f32.mxu0 0.0
  %586 = vmatmul.mubr.f32.gmra.mrb[0].mxu0 %v186
  %v587 = vpop.f32.mrb[0].mxu0
  %v588 = vadd.f32 %v116, %v587
  %v589 = vpop.f32.mrb[0].mxu0
  %590 = vmatprep.mubr.f32.mxu0 0.0
  %591 = vmatmul.mubr.f32.gmra.mrb[0].mxu0 %v189
  %v592 = vpop.f32.mrb[0].mxu0
  %v593 = vadd.f32 %v116, %v592
  %v594 = vpop.f32.mrb[0].mxu0
  %595 = vmatprep.mubr.f32.mxu0 0.0
  %596 = vmatmul.mubr.f32.gmra.mrb[0].mxu0 %v192
  %v597 = vpop.f32.mrb[0].mxu0
  %v598 = vadd.f32 %v116, %v597
  %v599 = vpop.f32.mrb[0].mxu0
  %600 = vmatprep.mubr.f32.mxu0 0.0
  %601 = vmatmul.mubr.f32.gmra.mrb[0].mxu0 %v195
  %v602 = vpop.f32.mrb[0].mxu0
  %v603 = vadd.f32 %v116, %v602
  %v604 = vpop.f32.mrb[0].mxu0
  %605 = vmatprep.mubr.f32.mxu0 0.0
  %606 = vmatmul.mubr.f32.gmra.mrb[0].mxu0 %v198
  %v607 = vpop.f32.mrb[0].mxu0
  %v608 = vadd.f32 %v116, %v607
  %v609 = vpop.f32.mrb[0].mxu0
  %610 = vmatprep.mubr.f32.mxu0 0.0
  %611 = vmatmul.mubr.f32.gmra.mrb[0].mxu0 %v201
  %v612 = vpop.f32.mrb[0].mxu0
  %v613 = vadd.f32 %v116, %v612
  %v614 = vpop.f32.mrb[0].mxu0
  %615 = vmatprep.mubr.f32.mxu0 0.0
  %616 = vmatmul.mubr.f32.gmra.mrb[0].mxu0 %v204
  %v617 = vpop.f32.mrb[0].mxu0
  %v618 = vadd.f32 %v116, %v617
  %v619 = vpop.f32.mrb[0].mxu0
  %620 = vmatprep.mubr.f32.mxu0 0.0
  %621 = vmatmul.mubr.f32.gmra.mrb[0].mxu0 %v207
  %v622 = vpop.f32.mrb[0].mxu0
  %v623 = vadd.f32 %v116, %v622
  %v624 = vpop.f32.mrb[0].mxu0
  %625 = vmatprep.mubr.f32.mxu0 0.0
  %626 = vmatmul.mubr.f32.gmra.mrb[0].mxu0 %v210
  %v627 = vpop.f32.mrb[0].mxu0
  %v628 = vadd.f32 %v116, %v627
  %v629 = vpop.f32.mrb[0].mxu0
  %630 = vmatprep.mubr.f32.mxu0 0.0
  %631 = vmatmul.mubr.f32.gmra.mrb[0].mxu0 %v213
  %v632 = vpop.f32.mrb[0].mxu0
  %v633 = vadd.f32 %v116, %v632
  %v634 = vpop.f32.mrb[0].mxu0
  %635 = vmatprep.mubr.f32.mxu0 0.0
  %636 = vmatmul.mubr.f32.gmra.mrb[0].mxu0 %v216
  %v637 = vpop.f32.mrb[0].mxu0
  %v638 = vadd.f32 %v116, %v637
  %v639 = vpop.f32.mrb[0].mxu0
  %640 = vmatprep.mubr.f32.mxu0 0.0
  %641 = vmatmul.mubr.f32.gmra.mrb[0].mxu0 %v219
  %v642 = vpop.f32.mrb[0].mxu0
  %v643 = vadd.f32 %v116, %v642
  %v644 = vpop.f32.mrb[0].mxu0
  %645 = vmatprep.mubr.f32.mxu0 0.0
  %646 = vmatmul.mubr.f32.gmra.mrb[0].mxu0 %v222
  %v647 = vpop.f32.mrb[0].mxu0
  %v648 = vadd.f32 %v116, %v647
  %v649 = vpop.f32.mrb[0].mxu0
  %650 = vmatprep.mubr.f32.mxu0 0.0
  %651 = vmatmul.mubr.f32.gmra.mrb[0].mxu0 %v225
  %v652 = vpop.f32.mrb[0].mxu0
  %v653 = vadd.f32 %v116, %v652
  %v654 = vpop.f32.mrb[0].mxu0
  %655 = vmatprep.mubr.f32.mxu0 0.0
  %656 = vmatmul.mubr.f32.gmra.mrb[0].mxu0 %v228
  %v657 = vpop.f32.mrb[0].mxu0
  %v658 = vadd.f32 %v116, %v657
  %v659 = vpop.f32.mrb[0].mxu0
  %660 = vmatprep.mubr.f32.mxu0 0.0
  %661 = vmatmul.mubr.f32.gmra.mrb[0].mxu0 %v231
  %v662 = vpop.f32.mrb[0].mxu0
  %v663 = vadd.f32 %v116, %v662
  %v664 = vpop.f32.mrb[0].mxu0
  %665 = vmatprep.mubr.f32.mxu0 0.0
  %666 = vmatmul.mubr.f32.gmra.mrb[0].mxu0 %v234
  %v667 = vpop.f32.mrb[0].mxu0
  %v668 = vadd.f32 %v116, %v667
  %v669 = vpop.f32.mrb[0].mxu0
  %670 = vmatprep.mubr.f32.mxu0 0.0
  %671 = vmatmul.mubr.f32.gmra.mrb[0].mxu0 %v237
  %v672 = vpop.f32.mrb[0].mxu0
  %v673 = vadd.f32 %v116, %v672
  %v674 = vpop.f32.mrb[0].mxu0
  %675 = vmatprep.mubr.f32.mxu0 0.0
  %676 = vmatmul.mubr.f32.gmra.mrb[0].mxu0 %v240
  %v677 = vpop.f32.mrb[0].mxu0
  %v678 = vadd.f32 %v116, %v677
  %v679 = vpop.f32.mrb[0].mxu0
  %680 = vmatprep.mubr.f32.mxu0 0.0
  %681 = vmatmul.mubr.f32.gmra.mrb[0].mxu0 %v243
  %v682 = vpop.f32.mrb[0].mxu0
  %v683 = vadd.f32 %v116, %v682
  %v684 = vpop.f32.mrb[0].mxu0
  %685 = vmatprep.mubr.f32.mxu0 0.0
  %686 = vmatmul.mubr.f32.gmra.mrb[0].mxu0 %v246
  %v687 = vpop.f32.mrb[0].mxu0
  %v688 = vadd.f32 %v116, %v687
  %v689 = vpop.f32.mrb[0].mxu0
  %690 = vmatprep.mubr.f32.mxu0 0.0
  %691 = vmatmul.mubr.f32.gmra.mrb[0].mxu0 %v249
  %v692 = vpop.f32.mrb[0].mxu0
  %v693 = vadd.f32 %v116, %v692
  %v694 = vpop.f32.mrb[0].mxu0
  %695 = vmatprep.mubr.f32.mxu0 0.0
  %696 = vmatmul.mubr.f32.gmra.mrb[0].mxu0 %v252
  %v697 = vpop.f32.mrb[0].mxu0
  %v698 = vadd.f32 %v116, %v697
  %v699 = vpop.f32.mrb[0].mxu0
  %700 = vmatprep.mubr.f32.mxu0 0.0
  %701 = vmatmul.mubr.f32.gmra.mrb[0].mxu0 %v255
  %v702 = vpop.f32.mrb[0].mxu0
  %v703 = vadd.f32 %v116, %v702
  %v704 = vpop.f32.mrb[0].mxu0
  %705 = vmatprep.mubr.f32.mxu0 0.0
  %706 = vmatmul.mubr.f32.gmra.mrb[0].mxu0 %v258
  %v707 = vpop.f32.mrb[0].mxu0
  %v708 = vadd.f32 %v116, %v707
  %v709 = vpop.f32.mrb[0].mxu0
  %710 = vmatprep.mubr.f32.mxu0 0.0
  %711 = vmatmul.mubr.f32.gmra.mrb[0].mxu0 %v261
  %v712 = vpop.f32.mrb[0].mxu0
  %v713 = vadd.f32 %v116, %v712
  %v714 = vpop.f32.mrb[0].mxu0
  %715 = vmatprep.mubr.f32.mxu0 0.0
  %716 = vmatmul.mubr.f32.gmra.mrb[0].mxu0 %v264
  %v717 = vpop.f32.mrb[0].mxu0
  %v718 = vadd.f32 %v116, %v717
  %v719 = vpop.f32.mrb[0].mxu0
  %720 = vmatprep.mubr.f32.mxu0 0.0
  %721 = vmatmul.mubr.f32.gmra.mrb[0].mxu0 %v267
  %v722 = vpop.f32.mrb[0].mxu0
  %v723 = vadd.f32 %v116, %v722
  %v724 = vpop.f32.mrb[0].mxu0
  %725 = vmatprep.mubr.f32.mxu0 0.0
  %726 = vmatmul.mubr.f32.gmra.mrb[0].mxu0 %v270
  %v727 = vpop.f32.mrb[0].mxu0
  %v728 = vadd.f32 %v116, %v727
  %v729 = vpop.f32.mrb[0].mxu0
  %730 = vmatprep.mubr.f32.mxu0 0.0
  %731 = vmatmul.mubr.f32.gmra.mrb[0].mxu0 %v273
  %v732 = vpop.f32.mrb[0].mxu0
  %v733 = vadd.f32 %v116, %v732
  %v734 = vpop.f32.mrb[0].mxu0
  %735 = vmatprep.mubr.f32.mxu0 0.0
  %736 = vmatmul.mubr.f32.gmra.mrb[0].mxu0 %v276
  %v737 = vpop.f32.mrb[0].mxu0
  %v738 = vadd.f32 %v116, %v737
  %v739 = vpop.f32.mrb[0].mxu0
  %740 = vmatprep.mubr.f32.mxu0 0.0
  %741 = vmatmul.mubr.f32.gmra.mrb[0].mxu0 %v279
  %v742 = vpop.f32.mrb[0].mxu0
  %v743 = vadd.f32 %v116, %v742
  %v744 = vpop.f32.mrb[0].mxu0
  %745 = vmatprep.mubr.f32.mxu0 0.0
  %746 = vmatmul.mubr.f32.gmra.mrb[0].mxu0 %v282
  %v747 = vpop.f32.mrb[0].mxu0
  %v748 = vadd.f32 %v116, %v747
  %v749 = vpop.f32.mrb[0].mxu0
  %750 = vmatprep.mubr.f32.mxu0 0.0
  %751 = vmatmul.mubr.f32.gmra.mrb[0].mxu0 %v285
  %v752 = vpop.f32.mrb[0].mxu0
  %v753 = vadd.f32 %v116, %v752
  %v754 = vpop.f32.mrb[0].mxu0
  %755 = vmatprep.mubr.f32.mxu0 0.0
  %756 = vmatmul.mubr.f32.gmra.mrb[0].mxu0 %v288
  %v757 = vpop.f32.mrb[0].mxu0
  %v758 = vadd.f32 %v116, %v757
  %v759 = vpop.f32.mrb[0].mxu0
  %760 = vmatprep.mubr.f32.mxu0 0.0
  %761 = vmatmul.mubr.f32.gmra.mrb[0].mxu0 %v291
  %v762 = vpop.f32.mrb[0].mxu0
  %v763 = vadd.f32 %v116, %v762
  %v764 = vpop.f32.mrb[0].mxu0
  %765 = vmatprep.mubr.f32.mxu0 0.0
  %766 = vmatmul.mubr.f32.gmra.mrb[0].mxu0 %v294
  %v767 = vpop.f32.mrb[0].mxu0
  %v768 = vadd.f32 %v116, %v767
  %v769 = vpop.f32.mrb[0].mxu0
  %770 = vmatprep.mubr.f32.mxu0 0.0
  %771 = vmatmul.mubr.f32.gmra.mrb[0].mxu0 %v297
  %v772 = vpop.f32.mrb[0].mxu0
  %v773 = vadd.f32 %v116, %v772
  %v774 = vpop.f32.mrb[0].mxu0
  %775 = vmatprep.mubr.f32.mxu0 0.0
  %776 = vmatmul.mubr.f32.gmra.mrb[0].mxu0 %v300
  %v777 = vpop.f32.mrb[0].mxu0
  %v778 = vadd.f32 %v116, %v777
  %v779 = vpop.f32.mrb[0].mxu0
  %780 = vmatprep.mubr.f32.mxu0 0.0
  %781 = vmatmul.mubr.f32.gmra.mrb[0].mxu0 %v303
  %v782 = vpop.f32.mrb[0].mxu0
  %v783 = vadd.f32 %v116, %v782
  %v784 = vpop.f32.mrb[0].mxu0
  %785 = vmatprep.mubr.f32.mxu0 0.0
  %786 = vmatmul.mubr.f32.gmra.mrb[0].mxu0 %v306
  %v787 = vpop.f32.mrb[0].mxu0
  %v788 = vadd.f32 %v116, %v787
  %v789 = vpop.f32.mrb[0].mxu0
  %790 = vmatprep.mubr.f32.mxu0 0.0
  %791 = vmatmul.mubr.f32.gmra.mrb[0].mxu0 %v309
  %v792 = vpop.f32.mrb[0].mxu0
  %v793 = vadd.f32 %v116, %v792
  %v794 = vpop.f32.mrb[0].mxu0
  %795 = vmatprep.mubr.f32.mxu0 0.0
  %796 = vmatmul.mubr.f32.gmra.mrb[0].mxu0 %v312
  %v797 = vpop.f32.mrb[0].mxu0
  %v798 = vadd.f32 %v116, %v797
  %v799 = vpop.f32.mrb[0].mxu0
  %800 = vmatprep.mubr.f32.mxu0 0.0
  %801 = vmatmul.mubr.f32.gmra.mrb[0].mxu0 %v315
  %v802 = vpop.f32.mrb[0].mxu0
  %v803 = vadd.f32 %v116, %v802
  %v804 = vpop.f32.mrb[0].mxu0
  %805 = vmatprep.mubr.f32.mxu0 0.0
  %806 = vmatmul.mubr.f32.gmra.mrb[0].mxu0 %v318
  %v807 = vpop.f32.mrb[0].mxu0
  %v808 = vadd.f32 %v116, %v807
  %v809 = vpop.f32.mrb[0].mxu0
  %810 = vmatprep.mubr.f32.mxu0 0.0
  %811 = vmatmul.mubr.f32.gmra.mrb[0].mxu0 %v321
  %v812 = vpop.f32.mrb[0].mxu0
  %v813 = vadd.f32 %v116, %v812
  %v814 = vpop.f32.mrb[0].mxu0
  %815 = vmatprep.mubr.f32.mxu0 0.0
  %816 = vmatmul.mubr.f32.gmra.mrb[0].mxu0 %v324
  %v817 = vpop.f32.mrb[0].mxu0
  %v818 = vadd.f32 %v116, %v817
  %v819 = vpop.f32.mrb[0].mxu0
  %820 = vmatprep.mubr.f32.mxu0 0.0
  %821 = vmatmul.mubr.f32.gmra.mrb[0].mxu0 %v327
  %v822 = vpop.f32.mrb[0].mxu0
  %v823 = vadd.f32 %v116, %v822
  %v824 = vpop.f32.mrb[0].mxu0
  %825 = vmatprep.mubr.f32.mxu0 0.0
  %826 = vmatmul.mubr.f32.gmra.mrb[0].mxu0 %v330
  %v827 = vpop.f32.mrb[0].mxu0
  %v828 = vadd.f32 %v116, %v827
  %v829 = vpop.f32.mrb[0].mxu0
  %830 = vmatprep.mubr.f32.mxu0 0.0
  %831 = vmatmul.mubr.f32.gmra.mrb[0].mxu0 %v333
  %v832 = vpop.f32.mrb[0].mxu0
  %v833 = vadd.f32 %v116, %v832
  %v834 = vpop.f32.mrb[0].mxu0
  %835 = vmatprep.mubr.f32.mxu0 0.0
  %836 = vmatmul.mubr.f32.gmra.mrb[0].mxu0 %v336
  %v837 = vpop.f32.mrb[0].mxu0
  %v838 = vadd.f32 %v116, %v837
  %v839 = vpop.f32.mrb[0].mxu0
  %840 = vmatprep.mubr.f32.mxu0 0.0
  %841 = vmatmul.mubr.f32.gmra.mrb[0].mxu0 %v339
  %v842 = vpop.f32.mrb[0].mxu0
  %v843 = vadd.f32 %v116, %v842
  %v844 = vpop.f32.mrb[0].mxu0
  %845 = vmatprep.mubr.f32.mxu0 0.0
  %846 = vmatmul.mubr.f32.gmra.mrb[0].mxu0 %v342
  %v847 = vpop.f32.mrb[0].mxu0
  %v848 = vadd.f32 %v116, %v847
  %v849 = vpop.f32.mrb[0].mxu0
  %850 = vmatprep.mubr.f32.mxu0 0.0
  %851 = vmatmul.mubr.f32.gmra.mrb[0].mxu0 %v345
  %v852 = vpop.f32.mrb[0].mxu0
  %v853 = vadd.f32 %v116, %v852
  %v854 = vpop.f32.mrb[0].mxu0
  %855 = vmatprep.mubr.f32.mxu0 0.0
  %856 = vmatmul.mubr.f32.gmra.mrb[0].mxu0 %v348
  %v857 = vpop.f32.mrb[0].mxu0
  %v858 = vadd.f32 %v116, %v857
  %v859 = vpop.f32.mrb[0].mxu0
  %860 = vmatprep.mubr.f32.mxu0 0.0
  %861 = vmatmul.mubr.f32.gmra.mrb[0].mxu0 %v351
  %v862 = vpop.f32.mrb[0].mxu0
  %v863 = vadd.f32 %v116, %v862
  %v864 = vpop.f32.mrb[0].mxu0
  %865 = vmatprep.mubr.f32.mxu0 0.0
  %866 = vmatmul.mubr.f32.gmra.mrb[0].mxu0 %v354
  %v867 = vpop.f32.mrb[0].mxu0
  %v868 = vadd.f32 %v116, %v867
  %v869 = vpop.f32.mrb[0].mxu0
  %870 = vmatprep.mubr.f32.mxu0 0.0
  %871 = vmatmul.mubr.f32.gmra.mrb[0].mxu0 %v357
  %v872 = vpop.f32.mrb[0].mxu0
  %v873 = vadd.f32 %v116, %v872
  %v874 = vpop.f32.mrb[0].mxu0
  %875 = vmatprep.mubr.f32.mxu0 0.0
  %876 = vmatmul.mubr.f32.gmra.mrb[0].mxu0 %v360
  %v877 = vpop.f32.mrb[0].mxu0
  %v878 = vadd.f32 %v116, %v877
  %v879 = vpop.f32.mrb[0].mxu0
  %880 = vmatprep.mubr.f32.mxu0 0.0
  %881 = vmatmul.mubr.f32.gmra.mrb[0].mxu0 %v363
  %v882 = vpop.f32.mrb[0].mxu0
  %v883 = vadd.f32 %v116, %v882
  %v884 = vpop.f32.mrb[0].mxu0
  %885 = vmatprep.mubr.f32.mxu0 0.0
  %886 = vmatmul.mubr.f32.gmra.mrb[0].mxu0 %v366
  %v887 = vpop.f32.mrb[0].mxu0
  %v888 = vadd.f32 %v116, %v887
  %v889 = vpop.f32.mrb[0].mxu0
  %890 = vmatprep.mubr.f32.mxu0 0.0
  %891 = vmatmul.mubr.f32.gmra.mrb[0].mxu0 %v369
  %v892 = vpop.f32.mrb[0].mxu0
  %v893 = vadd.f32 %v116, %v892
  %v894 = vpop.f32.mrb[0].mxu0
  %895 = vmatprep.mubr.f32.mxu0 0.0
  %896 = vmatmul.mubr.f32.gmra.mrb[0].mxu0 %v372
  %v897 = vpop.f32.mrb[0].mxu0
  %v898 = vadd.f32 %v116, %v897
  %v899 = vpop.f32.mrb[0].mxu0
  %900 = vmatprep.mubr.f32.mxu0 0.0
  %901 = vmatmul.mubr.f32.gmra.mrb[0].mxu0 %v375
  %v902 = vpop.f32.mrb[0].mxu0
  %v903 = vadd.f32 %v116, %v902
  %v904 = vpop.f32.mrb[0].mxu0
  %905 = vmatprep.mubr.f32.mxu0 0.0
  %906 = vmatmul.mubr.f32.gmra.mrb[0].mxu0 %v378
  %v907 = vpop.f32.mrb[0].mxu0
  %v908 = vadd.f32 %v116, %v907
  %v909 = vpop.f32.mrb[0].mxu0
  %910 = vmatprep.mubr.f32.mxu0 0.0
  %911 = vmatmul.mubr.f32.gmra.mrb[0].mxu0 %v381
  %v912 = vpop.f32.mrb[0].mxu0
  %v913 = vadd.f32 %v116, %v912
  %v914 = vpop.f32.mrb[0].mxu0
  %915 = vmatprep.mubr.f32.mxu0 0.0
  %916 = vmatmul.mubr.f32.gmra.mrb[0].mxu0 %v384
  %v917 = vpop.f32.mrb[0].mxu0
  %v918 = vadd.f32 %v116, %v917
  %v919 = vpop.f32.mrb[0].mxu0
  %920 = vmatprep.mubr.f32.mxu0 0.0
  %921 = vmatmul.mubr.f32.gmra.mrb[0].mxu0 %v387
  %v922 = vpop.f32.mrb[0].mxu0
  %v923 = vadd.f32 %v116, %v922
  %v924 = vpop.f32.mrb[0].mxu0
  %925 = vmatprep.mubr.f32.mxu0 0.0
  %926 = vmatmul.mubr.f32.gmra.mrb[0].mxu0 %v390
  %v927 = vpop.f32.mrb[0].mxu0
  %v928 = vadd.f32 %v116, %v927
  %v929 = vpop.f32.mrb[0].mxu0
  %930 = vmatprep.mubr.f32.mxu0 0.0
  %931 = vmatmul.mubr.f32.gmra.mrb[0].mxu0 %v393
  %v932 = vpop.f32.mrb[0].mxu0
  %v933 = vadd.f32 %v116, %v932
  %v934 = vpop.f32.mrb[0].mxu0
  %935 = vmatprep.mubr.f32.mxu0 0.0
  %936 = vmatmul.mubr.f32.gmra.mrb[0].mxu0 %v396
  %v937 = vpop.f32.mrb[0].mxu0
  %v938 = vadd.f32 %v116, %v937
  %v939 = vpop.f32.mrb[0].mxu0
  %940 = vmatprep.mubr.f32.mxu0 0.0
  %941 = vmatmul.mubr.f32.gmra.mrb[0].mxu0 %v399
  %v942 = vpop.f32.mrb[0].mxu0
  %v943 = vadd.f32 %v116, %v942
  %v944 = vpop.f32.mrb[0].mxu0
  %945 = vmatprep.mubr.f32.mxu0 0.0
  %946 = vmatmul.mubr.f32.gmra.mrb[0].mxu0 %v402
  %v947 = vpop.f32.mrb[0].mxu0
  %v948 = vadd.f32 %v116, %v947
  %v949 = vpop.f32.mrb[0].mxu0
  %950 = vmatprep.mubr.f32.mxu0 0.0
  %951 = vmatmul.mubr.f32.gmra.mrb[0].mxu0 %v405
  %v952 = vpop.f32.mrb[0].mxu0
  %v953 = vadd.f32 %v116, %v952
  %v954 = vpop.f32.mrb[0].mxu0
  %955 = vdwg.mxu0
  %v956 = vmax.f32 %v478, 0.0
  %v957 = vmax.f32 %v483, 0.0
  %v958 = vmax.f32 %v488, 0.0
  %v959 = vmax.f32 %v493, 0.0
  %v960 = vmax.f32 %v498, 0.0
  %v961 = vmax.f32 %v503, 0.0
  %v962 = vmax.f32 %v508, 0.0
  %v963 = vmax.f32 %v513, 0.0
  %v964 = vmax.f32 %v518, 0.0
  %v965 = vmax.f32 %v523, 0.0
  %v966 = vmax.f32 %v528, 0.0
  %v967 = vmax.f32 %v533, 0.0
  %v968 = vmax.f32 %v538, 0.0
  %v969 = vmax.f32 %v543, 0.0
  %v970 = vmax.f32 %v548, 0.0
  %v971 = vmax.f32 %v553, 0.0
  %v972 = vmax.f32 %v558, 0.0
  %v973 = vmax.f32 %v563, 0.0
  %v974 = vmax.f32 %v568, 0.0
  %v975 = vmax.f32 %v573, 0.0
  %v976 = vmax.f32 %v578, 0.0
  %v977 = vmax.f32 %v583, 0.0
  %v978 = vmax.f32 %v588, 0.0
  %v979 = vmax.f32 %v593, 0.0
  %v980 = vmax.f32 %v598, 0.0
  %v981 = vmax.f32 %v603, 0.0
  %v982 = vmax.f32 %v608, 0.0
  %v983 = vmax.f32 %v613, 0.0
  %v984 = vmax.f32 %v618, 0.0
  %v985 = vmax.f32 %v623, 0.0
  %v986 = vmax.f32 %v628, 0.0
  %v987 = vmax.f32 %v633, 0.0
  %v988 = vmax.f32 %v638, 0.0
  %v989 = vmax.f32 %v643, 0.0
  %v990 = vmax.f32 %v648, 0.0
  %v991 = vmax.f32 %v653, 0.0
  %v992 = vmax.f32 %v658, 0.0
  %v993 = vmax.f32 %v663, 0.0
  %v994 = vmax.f32 %v668, 0.0
  %v995 = vmax.f32 %v673, 0.0
  %v996 = vmax.f32 %v678, 0.0
  %v997 = vmax.f32 %v683, 0.0
  %v998 = vmax.f32 %v688, 0.0
  %v999 = vmax.f32 %v693, 0.0
  %v1000 = vmax.f32 %v698, 0.0
  %v1001 = vmax.f32 %v703, 0.0
  %v1002 = vmax.f32 %v708, 0.0
  %v1003 = vmax.f32 %v713, 0.0
  %v1004 = vmax.f32 %v718, 0.0
  %v1005 = vmax.f32 %v723, 0.0
  %v1006 = vmax.f32 %v728, 0.0
  %v1007 = vmax.f32 %v733, 0.0
  %v1008 = vmax.f32 %v738, 0.0
  %v1009 = vmax.f32 %v743, 0.0
  %v1010 = vmax.f32 %v748, 0.0
  %v1011 = vmax.f32 %v753, 0.0
  %v1012 = vmax.f32 %v758, 0.0
  %v1013 = vmax.f32 %v763, 0.0
  %v1014 = vmax.f32 %v768, 0.0
  %v1015 = vmax.f32 %v773, 0.0
  %v1016 = vmax.f32 %v778, 0.0
  %v1017 = vmax.f32 %v783, 0.0
  %v1018 = vmax.f32 %v788, 0.0
  %v1019 = vmax.f32 %v793, 0.0
  %v1020 = vmax.f32 %v798, 0.0
  %v1021 = vmax.f32 %v803, 0.0
  %v1022 = vmax.f32 %v808, 0.0
  %v1023 = vmax.f32 %v813, 0.0
  %v1024 = vmax.f32 %v818, 0.0
  %v1025 = vmax.f32 %v823, 0.0
  %v1026 = vmax.f32 %v828, 0.0
  %v1027 = vmax.f32 %v833, 0.0
  %v1028 = vmax.f32 %v838, 0.0
  %v1029 = vmax.f32 %v843, 0.0
  %v1030 = vmax.f32 %v848, 0.0
  %v1031 = vmax.f32 %v853, 0.0
  %v1032 = vmax.f32 %v858, 0.0
  %v1033 = vmax.f32 %v863, 0.0
  %v1034 = vmax.f32 %v868, 0.0
  %v1035 = vmax.f32 %v873, 0.0
  %v1036 = vmax.f32 %v878, 0.0
  %v1037 = vmax.f32 %v883, 0.0
  %v1038 = vmax.f32 %v888, 0.0
  %v1039 = vmax.f32 %v893, 0.0
  %v1040 = vmax.f32 %v898, 0.0
  %v1041 = vmax.f32 %v903, 0.0
  %v1042 = vmax.f32 %v908, 0.0
  %v1043 = vmax.f32 %v913, 0.0
  %v1044 = vmax.f32 %v918, 0.0
  %v1045 = vmax.f32 %v923, 0.0
  %v1046 = vmax.f32 %v928, 0.0
  %v1047 = vmax.f32 %v933, 0.0
  %v1048 = vmax.f32 %v938, 0.0
  %v1049 = vmax.f32 %v943, 0.0
  %v1050 = vmax.f32 %v948, 0.0
  %v1051 = vmax.f32 %v953, 0.0
  %vm1052 = vcmask 261120
  %1053 = vst.msk [vmem:[%s3] sm:$0xff] %vm1052, %v956
  %1054 = vst.msk [vmem:[%s3 + $0x8] sm:$0xff] %vm1052, %v957
  %1055 = vst.msk [vmem:[%s3 + $0x10] sm:$0xff] %vm1052, %v958
  %1056 = vst.msk [vmem:[%s3 + $0x18] sm:$0xff] %vm1052, %v959
  %1057 = vst.msk [vmem:[%s3 + $0x20] sm:$0xff] %vm1052, %v960
  %1058 = vst.msk [vmem:[%s3 + $0x28] sm:$0xff] %vm1052, %v961
  %1059 = vst.msk [vmem:[%s3 + $0x30] sm:$0xff] %vm1052, %v962
  %1060 = vst.msk [vmem:[%s3 + $0x38] sm:$0xff] %vm1052, %v963
  %1061 = vst.msk [vmem:[%s3 + $0x40] sm:$0xff] %vm1052, %v964
  %1062 = vst.msk [vmem:[%s3 + $0x48] sm:$0xff] %vm1052, %v965
  %1063 = vst.msk [vmem:[%s3 + $0x50] sm:$0xff] %vm1052, %v966
  %1064 = vst.msk [vmem:[%s3 + $0x58] sm:$0xff] %vm1052, %v967
  %1065 = vst.msk [vmem:[%s3 + $0x60] sm:$0xff] %vm1052, %v968
  %1066 = vst.msk [vmem:[%s3 + $0x68] sm:$0xff] %vm1052, %v969
  %1067 = vst.msk [vmem:[%s3 + $0x70] sm:$0xff] %vm1052, %v970
  %1068 = vst.msk [vmem:[%s3 + $0x78] sm:$0xff] %vm1052, %v971
  %1069 = vst.msk [vmem:[%s3 + $0x80] sm:$0xff] %vm1052, %v972
  %1070 = vst.msk [vmem:[%s3 + $0x88] sm:$0xff] %vm1052, %v973
  %1071 = vst.msk [vmem:[%s3 + $0x90] sm:$0xff] %vm1052, %v974
  %1072 = vst.msk [vmem:[%s3 + $0x98] sm:$0xff] %vm1052, %v975
  %1073 = vst.msk [vmem:[%s3 + $0xa0] sm:$0xff] %vm1052, %v976
  %1074 = vst.msk [vmem:[%s3 + $0xa8] sm:$0xff] %vm1052, %v977
  %1075 = vst.msk [vmem:[%s3 + $0xb0] sm:$0xff] %vm1052, %v978
  %1076 = vst.msk [vmem:[%s3 + $0xb8] sm:$0xff] %vm1052, %v979
  %1077 = vst.msk [vmem:[%s3 + $0xc0] sm:$0xff] %vm1052, %v980
  %1078 = vst.msk [vmem:[%s3 + $0xc8] sm:$0xff] %vm1052, %v981
  %1079 = vst.msk [vmem:[%s3 + $0xd0] sm:$0xff] %vm1052, %v982
  %1080 = vst.msk [vmem:[%s3 + $0xd8] sm:$0xff] %vm1052, %v983
  %1081 = vst.msk [vmem:[%s3 + $0xe0] sm:$0xff] %vm1052, %v984
  %1082 = vst.msk [vmem:[%s3 + $0xe8] sm:$0xff] %vm1052, %v985
  %1083 = vst.msk [vmem:[%s3 + $0xf0] sm:$0xff] %vm1052, %v986
  %1084 = vst.msk [vmem:[%s3 + $0xf8] sm:$0xff] %vm1052, %v987
  %1085 = vst.msk [vmem:[%s3 + $0x100] sm:$0xff] %vm1052, %v988
  %1086 = vst.msk [vmem:[%s3 + $0x108] sm:$0xff] %vm1052, %v989
  %1087 = vst.msk [vmem:[%s3 + $0x110] sm:$0xff] %vm1052, %v990
  %1088 = vst.msk [vmem:[%s3 + $0x118] sm:$0xff] %vm1052, %v991
  %1089 = vst.msk [vmem:[%s3 + $0x120] sm:$0xff] %vm1052, %v992
  %1090 = vst.msk [vmem:[%s3 + $0x128] sm:$0xff] %vm1052, %v993
  %1091 = vst.msk [vmem:[%s3 + $0x130] sm:$0xff] %vm1052, %v994
  %1092 = vst.msk [vmem:[%s3 + $0x138] sm:$0xff] %vm1052, %v995
  %1093 = vst.msk [vmem:[%s3 + $0x140] sm:$0xff] %vm1052, %v996
  %1094 = vst.msk [vmem:[%s3 + $0x148] sm:$0xff] %vm1052, %v997
  %1095 = vst.msk [vmem:[%s3 + $0x150] sm:$0xff] %vm1052, %v998
  %1096 = vst.msk [vmem:[%s3 + $0x158] sm:$0xff] %vm1052, %v999
  %1097 = vst.msk [vmem:[%s3 + $0x160] sm:$0xff] %vm1052, %v1000
  %1098 = vst.msk [vmem:[%s3 + $0x168] sm:$0xff] %vm1052, %v1001
  %1099 = vst.msk [vmem:[%s3 + $0x170] sm:$0xff] %vm1052, %v1002
  %1100 = vst.msk [vmem:[%s3 + $0x178] sm:$0xff] %vm1052, %v1003
  %1101 = vst.msk [vmem:[%s3 + $0x180] sm:$0xff] %vm1052, %v1004
  %1102 = vst.msk [vmem:[%s3 + $0x188] sm:$0xff] %vm1052, %v1005
  %1103 = vst.msk [vmem:[%s3 + $0x190] sm:$0xff] %vm1052, %v1006
  %1104 = vst.msk [vmem:[%s3 + $0x198] sm:$0xff] %vm1052, %v1007
  %1105 = vst.msk [vmem:[%s3 + $0x1a0] sm:$0xff] %vm1052, %v1008
  %1106 = vst.msk [vmem:[%s3 + $0x1a8] sm:$0xff] %vm1052, %v1009
  %1107 = vst.msk [vmem:[%s3 + $0x1b0] sm:$0xff] %vm1052, %v1010
  %1108 = vst.msk [vmem:[%s3 + $0x1b8] sm:$0xff] %vm1052, %v1011
  %1109 = vst.msk [vmem:[%s3 + $0x1c0] sm:$0xff] %vm1052, %v1012
  %1110 = vst.msk [vmem:[%s3 + $0x1c8] sm:$0xff] %vm1052, %v1013
  %1111 = vst.msk [vmem:[%s3 + $0x1d0] sm:$0xff] %vm1052, %v1014
  %1112 = vst.msk [vmem:[%s3 + $0x1d8] sm:$0xff] %vm1052, %v1015
  %1113 = vst.msk [vmem:[%s3 + $0x1e0] sm:$0xff] %vm1052, %v1016
  %1114 = vst.msk [vmem:[%s3 + $0x1e8] sm:$0xff] %vm1052, %v1017
  %1115 = vst.msk [vmem:[%s3 + $0x1f0] sm:$0xff] %vm1052, %v1018
  %1116 = vst.msk [vmem:[%s3 + $0x1f8] sm:$0xff] %vm1052, %v1019
  %1117 = vst.msk [vmem:[%s3 + $0x200] sm:$0xff] %vm1052, %v1020
  %1118 = vst.msk [vmem:[%s3 + $0x208] sm:$0xff] %vm1052, %v1021
  %1119 = vst.msk [vmem:[%s3 + $0x210] sm:$0xff] %vm1052, %v1022
  %1120 = vst.msk [vmem:[%s3 + $0x218] sm:$0xff] %vm1052, %v1023
  %1121 = vst.msk [vmem:[%s3 + $0x220] sm:$0xff] %vm1052, %v1024
  %1122 = vst.msk [vmem:[%s3 + $0x228] sm:$0xff] %vm1052, %v1025
  %1123 = vst.msk [vmem:[%s3 + $0x230] sm:$0xff] %vm1052, %v1026
  %1124 = vst.msk [vmem:[%s3 + $0x238] sm:$0xff] %vm1052, %v1027
  %1125 = vst.msk [vmem:[%s3 + $0x240] sm:$0xff] %vm1052, %v1028
  %1126 = vst.msk [vmem:[%s3 + $0x248] sm:$0xff] %vm1052, %v1029
  %1127 = vst.msk [vmem:[%s3 + $0x250] sm:$0xff] %vm1052, %v1030
  %1128 = vst.msk [vmem:[%s3 + $0x258] sm:$0xff] %vm1052, %v1031
  %1129 = vst.msk [vmem:[%s3 + $0x260] sm:$0xff] %vm1052, %v1032
  %1130 = vst.msk [vmem:[%s3 + $0x268] sm:$0xff] %vm1052, %v1033
  %1131 = vst.msk [vmem:[%s3 + $0x270] sm:$0xff] %vm1052, %v1034
  %1132 = vst.msk [vmem:[%s3 + $0x278] sm:$0xff] %vm1052, %v1035
  %1133 = vst.msk [vmem:[%s3 + $0x280] sm:$0xff] %vm1052, %v1036
  %1134 = vst.msk [vmem:[%s3 + $0x288] sm:$0xff] %vm1052, %v1037
  %1135 = vst.msk [vmem:[%s3 + $0x290] sm:$0xff] %vm1052, %v1038
  %1136 = vst.msk [vmem:[%s3 + $0x298] sm:$0xff] %vm1052, %v1039
  %1137 = vst.msk [vmem:[%s3 + $0x2a0] sm:$0xff] %vm1052, %v1040
  %1138 = vst.msk [vmem:[%s3 + $0x2a8] sm:$0xff] %vm1052, %v1041
  %1139 = vst.msk [vmem:[%s3 + $0x2b0] sm:$0xff] %vm1052, %v1042
  %1140 = vst.msk [vmem:[%s3 + $0x2b8] sm:$0xff] %vm1052, %v1043
  %1141 = vst.msk [vmem:[%s3 + $0x2c0] sm:$0xff] %vm1052, %v1044
  %1142 = vst.msk [vmem:[%s3 + $0x2c8] sm:$0xff] %vm1052, %v1045
  %1143 = vst.msk [vmem:[%s3 + $0x2d0] sm:$0xff] %vm1052, %v1046
  %1144 = vst.msk [vmem:[%s3 + $0x2d8] sm:$0xff] %vm1052, %v1047
  %1145 = vst.msk [vmem:[%s3 + $0x2e0] sm:$0xff] %vm1052, %v1048
  %1146 = vst.msk [vmem:[%s3 + $0x2e8] sm:$0xff] %vm1052, %v1049
  %1147 = vst.msk [vmem:[%s3 + $0x2f0] sm:$0xff] %vm1052, %v1050
  %1148 = vst.msk [vmem:[%s3 + $0x2f8] sm:$0xff] %vm1052, %v1051
  // Predicated region
  $region14: #{tpu_custom_call.1} parent=0 // pred_check
    _
  $region15: #{tpu_custom_call.1} parent=0 // pred_check_branch
    %1150 = sbr.rel (0) target = $region17
  $region16: #{tpu_custom_call.1} parent=0 // pred_region
    _
  $region17: #{tpu_custom_call.1} parent=0 // pred_fallthru
    _
  // Predicated region
  $region18: #{tpu_custom_call.1} parent=0 // pred_check
    _
  $region19: #{tpu_custom_call.1} parent=0 // pred_check_branch
    %1152 = sbr.rel (0) target = $region21
  $region20: #{tpu_custom_call.1} parent=0 // pred_region
    _
  $region21: #{tpu_custom_call.1} parent=0 // pred_fallthru
    _

</llo_original>
